<compile_context>
chip_gen: v6e
topology: v6e:2x2x1
jax: 0.10.0
libtpu: 0.0.40
codegen_flags: <defaults>
</compile_context>

<pallas_src>
import functools

import jax
import jax.numpy as jnp
from jax.experimental import pallas as pl
from jax.experimental.pallas import tpu as pltpu


_TARGET_BLOCK_BYTES = 4 << 20   # ~4 MiB x/out blocks: HBM-roofline sweet spot
_VMEM_LIMIT_FLOOR = 32 << 20    # above v5e's 16 MiB scoped default
_VMEM_LIMIT_CAP = 64 << 20      # never ask for more than v7x physical VMEM


# ---------------------------------------------------------------------------
# Kernels
# ---------------------------------------------------------------------------
def _noise_block_kernel(x_ref, n_ref, w_ref, o_ref, *, cblk):
    """out = x + noise * weight for one (nblk, cblk, hwblk) tile.

    x_ref : (nblk, cblk, hwblk)  input tile
    n_ref : (nnblk, 1, hwblk)    noise tile (nnblk == nblk, or 1 for shared noise)
    w_ref : (C, 1)               full per-channel scale, resident in VMEM
                                 (constant block index -> fetched only once)
    """
    C = w_ref.shape[0]
    if cblk == C:
        w = w_ref[...]                                      # static full read
    else:
        start = pl.multiple_of(pl.program_id(1) * cblk, cblk)
        w = w_ref[pl.ds(start, cblk), :]                    # (cblk, 1)
    scaled = n_ref[...] * w[None, :, :]                     # (nnblk, cblk, hwblk)
    o_ref[...] = x_ref[...] + scaled                        # broadcasts over batch


def _flat_add_kernel(x_ref, s_ref, o_ref):
    """Lane-dense path for tiny H*W: out = x + (precomputed scaled noise)."""
    o_ref[...] = x_ref[...] + s_ref[...]


# ---------------------------------------------------------------------------
# Tiling helpers
# ---------------------------------------------------------------------------
def _sublane_quantum(dtype):
    # minimum second-to-last block dim per dtype: (8,128) f32, (16,128) bf16,
    # (32,128) for 8-bit types.
    return {4: 8, 2: 16, 1: 32}.get(jnp.dtype(dtype).itemsize, 8)


def _choose_tiles(N, C, HW, dtype, target_bytes):
    """Pick (nblk, cblk, hwblk) with per-block bytes near `target_bytes`."""
    itemsize = jnp.dtype(dtype).itemsize
    sub = _sublane_quantum(dtype)

    # Lane (HW) axis: full dim when small enough (always legal); otherwise the
    # largest multiple-of-128 divisor that keeps a `sub`-row block near target.
    if sub * HW * itemsize <= target_bytes or HW % 128 != 0:
        hwblk = HW
    else:
        cap = max(128, (target_bytes // (sub * itemsize)) // 128 * 128)
        hwblk = 128
        for d in range(min(cap, HW), 127, -128):
            if HW % d == 0:
                hwblk = d
                break

    # Sublane (C) axis: multiple of the dtype quantum dividing C, or full C.
    max_c = target_bytes // (hwblk * itemsize)
    if max_c >= C:
        cblk = C
    else:
        cblk = C                                    # full dim: always-legal fallback
        for d in range(max(sub, (max_c // sub) * sub), sub - 1, -sub):
            if C % d == 0:
                cblk = d
                break

    # Batch (N) axis: pack rows when a whole (1, C, HW) row is far below the
    # budget; keep >= 2 grid steps so v7x megacore has work on both cores.
    nblk = 1
    if cblk == C and hwblk == HW:
        row_bytes = C * HW * itemsize
        max_n = max(1, int(target_bytes // row_bytes))
        if N >= 2:
            max_n = min(max_n, N // 2)
        for d in range(min(max_n, N), 0, -1):
            if N % d == 0:
                nblk = d
                break
    return nblk, cblk, hwblk


def _vmem_limit_bytes(per_buffer_bytes):
    # Every pipelined operand is double-buffered; add headroom and clamp so we
    # stay inside every generation's physical VMEM (64 MiB on v7x).
    need = 2 * sum(per_buffer_bytes)
    return int(min(max(need + (8 << 20), _VMEM_LIMIT_FLOOR), _VMEM_LIMIT_CAP))


# ---------------------------------------------------------------------------
# Wrapper
# ---------------------------------------------------------------------------
def noise_block(x, noise_param, weight, randomize_noise=False, key=None,
                donate_x=False, target_block_bytes=_TARGET_BLOCK_BYTES):
    """Forward pass of NoiseBlock.

    x           : (N, C, H, W)
    noise_param : (1, 1, H, W)   learned noise parameter
    weight      : (C,)           per-channel noise scale
    donate_x    : alias the output onto x (only useful if x is donated/dead).
    """
    assert x.ndim == 4, "NoiseBlock expects 4-D input"
    N, C, H, W = x.shape
    assert weight.shape == (C,)
    assert noise_param.shape[-2:] == (H, W)
    HW = H * W
    dtype = x.dtype
    itemsize = jnp.dtype(dtype).itemsize

    if randomize_noise:
        assert key is not None, "randomize_noise=True requires a PRNG key"
        # TODO(synk): optional in-kernel pltpu.prng_* noise generation would
        # save one HBM round-trip of the noise tensor.
        noise = jax.random.normal(key, (N, 1, H, W), dtype=dtype)
    else:
        noise = noise_param.astype(dtype)
    Nn = noise.shape[0]

    io_alias = {0: 0} if donate_x else {}

    # ------------------- small-H*W path (HW < 128): lane-dense flat add -----
    if HW < 128:
        L = C * HW
        x2 = x.reshape(N, L)
        # One-time tiny precompute of weight-scaled noise (not per-element
        # pre-scaling of x), reused across all rows / grid steps.
        scaled = (noise * weight.astype(dtype).reshape(1, C, 1, 1)).reshape(Nn, L)

        sub = _sublane_quantum(dtype)
        row_bytes = L * itemsize
        nblk = N
        if N * row_bytes > target_block_bytes:
            cap = max(1, target_block_bytes // row_bytes)
            for d in range(min(cap, N), 0, -1):
                if N % d == 0 and (d % sub == 0 or d == N):
                    nblk = d
                    break

        s_nblk = nblk if Nn == N else 1
        s_idx = (lambda n: (n, 0)) if Nn == N else (lambda n: (0, 0))
        vmem = _vmem_limit_bytes([nblk * row_bytes, nblk * row_bytes,
                                  s_nblk * row_bytes])

        out2 = pl.pallas_call(
            _flat_add_kernel,
            out_shape=jax.ShapeDtypeStruct((N, L), dtype),
            grid_spec=pltpu.PrefetchScalarGridSpec(
                num_scalar_prefetch=0,
                grid=(N // nblk,),
                in_specs=[
                    pl.BlockSpec((nblk, L), lambda n: (n, 0)),
                    pl.BlockSpec((s_nblk, L), s_idx),
                ],
                out_specs=pl.BlockSpec((nblk, L), lambda n: (n, 0)),
            ),
            compiler_params=pltpu.CompilerParams(
                dimension_semantics=("parallel",),
                vmem_limit_bytes=vmem,
            ),
            input_output_aliases=io_alias,
        )(x2, scaled)
        return out2.reshape(N, C, H, W)

    # ------------------- main path: (N, C, HW) 3-D blocks -------------------
    x3 = x.reshape(N, C, HW)                 # lane axis = H*W (contiguous reshape)
    n3 = noise.reshape(Nn, 1, HW)
    w2 = weight.astype(dtype).reshape(C, 1)

    nblk, cblk, hwblk = _choose_tiles(N, C, HW, dtype, target_block_bytes)
    grid = (N // nblk, C // cblk, HW // hwblk)

    nnblk = nblk if Nn == N else 1
    if Nn == N:
        noise_idx = lambda n, c, h: (n, 0, h)
    else:                                    # shared learned noise row
        noise_idx = lambda n, c, h: (0, 0, h)

    x_bytes = nblk * cblk * hwblk * itemsize
    noise_bytes = nnblk * hwblk * 32                 # sublane-padded (1 -> 8x32-bit)
    w_bytes = (-(-C // 8) * 8) * 128 * itemsize      # lane-padded (C,1) slab
    vmem = _vmem_limit_bytes([x_bytes, x_bytes, noise_bytes, w_bytes])

    kernel = functools.partial(_noise_block_kernel, cblk=cblk)

    out3 = pl.pallas_call(
        kernel,
        out_shape=jax.ShapeDtypeStruct((N, C, HW), dtype),
        grid_spec=pltpu.PrefetchScalarGridSpec(
            num_scalar_prefetch=0,
            grid=grid,
            in_specs=[
                pl.BlockSpec((nblk, cblk, hwblk), lambda n, c, h: (n, c, h)),
                pl.BlockSpec((nnblk, 1, hwblk), noise_idx),
                pl.BlockSpec((C, 1), lambda n, c, h: (0, 0)),   # resident weight
            ],
            out_specs=pl.BlockSpec((nblk, cblk, hwblk), lambda n, c, h: (n, c, h)),
        ),
        compiler_params=pltpu.CompilerParams(
            dimension_semantics=("parallel", "parallel", "parallel"),
            vmem_limit_bytes=vmem,
        ),
        input_output_aliases=io_alias,
    )(x3, n3, w2)

    return out3.reshape(N, C, H, W)


# ---------------------------------------------------------------------------
# Demo / self-test
# ---------------------------------------------------------------------------
if __name__ == "__main__":
    key = jax.random.PRNGKey(0)
    k_x, k_np, k_w, k_rand, k_x2, k_np2, k_w2, k_x3, k_np3, k_w3 = (
        jax.random.split(key, 10))

    # Primary small shape (main path, HW = 256).
    N, C, H, W = 2, 4, 16, 16
    x = jax.random.normal(k_x, (N, C, H, W), dtype=jnp.float32)
    noise_param = jax.random.normal(k_np, (1, 1, H, W), dtype=jnp.float32)  # randn init
    weight_zero = jnp.zeros((C,), dtype=jnp.float32)                         # zeros init
    weight_rand = jax.random.normal(k_w, (C,), dtype=jnp.float32)

    # 1) Fixed (learned) noise, default zero weight -> identity.
    out = jax.block_until_ready(noise_block(x, noise_param, weight_zero))
    assert out.shape == x.shape and out.dtype == x.dtype
    assert jnp.allclose(out, x, atol=1e-6), "zero-weight identity mismatch"

    # 2) Fixed noise, non-trivial weight.
    out = jax.block_until_ready(noise_block(x, noise_param, weight_rand))
    ref = x + noise_param * weight_rand.reshape(1, -1, 1, 1)
    assert jnp.allclose(out, ref, atol=1e-5), "fixed-noise mismatch"

    # 3) Randomized noise (wrapper samples from the supplied key).
    out = jax.block_until_ready(
        noise_block(x, noise_param, weight_rand, randomize_noise=True, key=k_rand))
    rnd = jax.random.normal(k_rand, (N, 1, H, W), dtype=jnp.float32)
    ref = x + rnd * weight_rand.reshape(1, -1, 1, 1)
    assert jnp.allclose(out, ref, atol=1e-5), "randomized-noise mismatch"

    # 4) Small-H*W layer (HW < 128) -> lane-dense flattened path.
    N2, C2, H2, W2 = 2, 8, 8, 8
    x2 = jax.random.normal(k_x2, (N2, C2, H2, W2), dtype=jnp.float32)
    np2 = jax.random.normal(k_np2, (1, 1, H2, W2), dtype=jnp.float32)
    w2 = jax.random.normal(k_w2, (C2,), dtype=jnp.float32)
    out2 = jax.block_until_ready(noise_block(x2, np2, w2))
    ref2 = x2 + np2 * w2.reshape(1, -1, 1, 1)
    assert jnp.allclose(out2, ref2, atol=1e-5), "small-HW path mismatch"

    # 5) Exercise channel-block + HW-block tiling and the resident-weight
    #    dynamic slice by shrinking the block budget on a small shape.
    N3, C3, H3, W3 = 2, 16, 64, 64          # HW = 4096
    x3 = jax.random.normal(k_x3, (N3, C3, H3, W3), dtype=jnp.float32)
    np3 = jax.random.normal(k_np3, (1, 1, H3, W3), dtype=jnp.float32)
    w3 = jax.random.normal(k_w3, (C3,), dtype=jnp.float32)
    out3 = jax.block_until_ready(
        noise_block(x3, np3, w3, target_block_bytes=32 << 10))
    ref3 = x3 + np3 * w3.reshape(1, -1, 1, 1)
    assert jnp.allclose(out3, ref3, atol=1e-5), "tiled-grid path mismatch"

    print("KERNEL_OK")
</pallas_src>

<mosaic_0001>
module attributes {stable_mosaic.version = 11 : i64} {
  func.func @_noise_block_kernel(%arg0: i32, %arg1: i32, %arg2: i32, %arg3: memref<1x4x256xf32, #tpu.memory_space<vmem>>, %arg4: memref<1x1x256xf32, #tpu.memory_space<vmem>>, %arg5: memref<4x1xf32, #tpu.memory_space<vmem>>, %arg6: memref<1x4x256xf32, #tpu.memory_space<vmem>>) attributes {dimension_semantics = [#tpu.dimension_semantics<parallel>, #tpu.dimension_semantics<parallel>, #tpu.dimension_semantics<parallel>], iteration_bounds = array<i64: 2, 1, 1>, scalar_prefetch = 0 : i64, scratch_operands = 0 : i64, tpu.core_type = #tpu.core_type<tc>, window_params = [{transform_indices = @transform_0, window_bounds = array<i64: 1, 4, 256>}, {transform_indices = @transform_1, window_bounds = array<i64: 1, 1, 256>}, {pipeline_mode = #tpu.pipeline_mode<synchronous>, transform_indices = @transform_2, window_bounds = array<i64: 4, 1>}, {transform_indices = @transform_3, window_bounds = array<i64: 1, 4, 256>}]} {
    %c0 = arith.constant 0 : index
    %c0_0 = arith.constant 0 : index
    %0 = vector.load %arg5[%c0, %c0_0] : memref<4x1xf32, #tpu.memory_space<vmem>>, vector<4x1xf32>
    %c0_1 = arith.constant 0 : index
    %c0_2 = arith.constant 0 : index
    %c0_3 = arith.constant 0 : index
    %1 = vector.load %arg4[%c0_1, %c0_2, %c0_3] : memref<1x1x256xf32, #tpu.memory_space<vmem>>, vector<1x1x256xf32>
    %2 = vector.shape_cast %0 : vector<4x1xf32> to vector<1x4x1xf32>
    %3 = vector.broadcast %1 : vector<1x1x256xf32> to vector<1x4x256xf32>
    %4 = vector.broadcast %2 : vector<1x4x1xf32> to vector<1x4x256xf32>
    %5 = arith.mulf %3, %4 : vector<1x4x256xf32>
    %c0_4 = arith.constant 0 : index
    %c0_5 = arith.constant 0 : index
    %c0_6 = arith.constant 0 : index
    %6 = vector.load %arg3[%c0_4, %c0_5, %c0_6] : memref<1x4x256xf32, #tpu.memory_space<vmem>>, vector<1x4x256xf32>
    %7 = arith.addf %6, %5 : vector<1x4x256xf32>
    %c0_7 = arith.constant 0 : index
    %c0_8 = arith.constant 0 : index
    %c0_9 = arith.constant 0 : index
    %8 = vector.load %arg6[%c0_7, %c0_8, %c0_9] : memref<1x4x256xf32, #tpu.memory_space<vmem>>, vector<1x4x256xf32>
    tpu.vector_store %arg6[%c0_7, %c0_8, %c0_9], %7 {strides = array<i32>} : memref<1x4x256xf32, #tpu.memory_space<vmem>>, vector<1x4x256xf32>,
    return
  }
  func.func @transform_0(%arg0: i32, %arg1: i32, %arg2: i32) -> (i32, i32, i32) {
    %c0_i32 = arith.constant 0 : i32
    return %arg0, %arg1, %arg2 : i32, i32, i32
  }
  func.func @transform_1(%arg0: i32, %arg1: i32, %arg2: i32) -> (i32, i32, i32) {
    %c0_i32 = arith.constant 0 : i32
    %c0_i32_0 = arith.constant 0 : i32
    %c0_i32_1 = arith.constant 0 : i32
    return %c0_i32, %c0_i32_0, %arg2 : i32, i32, i32
  }
  func.func @transform_2(%arg0: i32, %arg1: i32, %arg2: i32) -> (i32, i32) {
    %c0_i32 = arith.constant 0 : i32
    %c0_i32_0 = arith.constant 0 : i32
    %c0_i32_1 = arith.constant 0 : i32
    return %c0_i32, %c0_i32_0 : i32, i32
  }
  func.func @transform_3(%arg0: i32, %arg1: i32, %arg2: i32) -> (i32, i32, i32) {
    %c0_i32 = arith.constant 0 : i32
    return %arg0, %arg1, %arg2 : i32, i32, i32
  }
}

</mosaic_0001>

<llo_original>
// kernel: tpu_custom_call.1
$region0: #{tpu_custom_call.1}
  #allocation0 [shape = 'u32[]', space=smem, size = 0x4, offset = 0x4, fixed_abs, tag = 'smem constant byte address 0x4 - core index']
  #allocation1 [shape = 'u32[144,128]{1,0:T(1,128)}', space=vmem, size = 0x12000, scoped, tag = 'internal scratch']
  %s0 = inlined_call_operand.hbm [shape: f32[2,4,256], index: 0, kind: input, shape index: {}]
  %s1 = inlined_call_operand.vmem [shape: f32[1,1,256], index: 1, kind: input, shape index: {}]
  %s2 = inlined_call_operand.vmem [shape: f32[4,1], index: 2, kind: input, shape index: {}]
  %s3 = inlined_call_operand.hbm [shape: f32[2,4,256], index: 3, kind: output, shape index: {}]
  %s4 = sld [smem:[#allocation0]]
  $region49: #{tpu_custom_call.1} parent=0
    _
  %s6 = ssub.s32 1, %s4
  %s7 = scalar_select 0, %s6, %s4
  $region1: #{tpu_custom_call.1} parent=0
    #allocation2 [shape = 'u8[8192]{0}', space=vmem, size = 0x2000, scoped, tag = 'input window, operand 0']
    #allocation3 [shape = 's32[2]{0}', space=sflag, size = 0x8, scoped, tag = 'scoped memory for tpu_custom_call.1']
    #allocation4 [shape = 's32[2]{0}', space=sflag, size = 0x8, scoped, tag = 'scoped memory for tpu_custom_call.1']
    #allocation5 [shape = 'u8[8192]{0}', space=vmem, size = 0x2000, scoped, tag = 'output window, operand 0']
    %8 = vsyncpa [#allocation3], 0
    %s9 = scalar_lea.sflag [#allocation3], 1
    %10 = vsyncpa %s9, 0
    %11 = vsyncpa [#allocation4], 0
    %s12 = scalar_lea.sflag [#allocation4], 1
    %13 = vsyncpa %s12, 0
    loop: start=0, step=1, limit=4
    $region2: #{tpu_custom_call.1} parent=1 // loop_pre_header
      _
    $region3: #{tpu_custom_call.1} parent=1 // loop_header
      %s15 = sphi 0, %s19
      %p16 = scmp.ge.s32.totalorder %s15, 4
      %s22 = sphi 0, %s41
      %s23 = sphi 0, %s37
      %s24 = sphi 0, %s33
      %s25 = sphi 0, %s22
      %s26 = sphi 0, %s23
      %s27 = sphi 0, %s24
      %s28 = sphi 0, %s25
      %s29 = sphi 0, %s26
      %s30 = sphi 0, %s27
      %s48 = sphi 0, %s50
      %s51 = sphi 0, %s48
      %s52 = sphi 0, %s51
      %s68 = sphi 0, %s52
      %s74 = sphi 0, %s76
      %s77 = sphi 0, %s74
      %s78 = sphi 0, %s77
      %s94 = sphi 0, %s78
      %s98 = sphi 0, %s98
      %s100 = sphi 0, %s98
      %s101 = sphi 0, %s100
      %s115 = sphi 0, %s101
      %s125 = sphi 0, %s127
      %s128 = sphi 0, %s125
      %s129 = sphi 0, %s128
      %s145 = sphi 0, %s129
    $region4: #{tpu_custom_call.1} parent=1 // loop_header_branch
      %18 = sbr.rel (%p16) target = $region8
    $region5: #{tpu_custom_call.1} parent=1 // loop_body
      %s20 = ssub.s32 %s15, 1
      %s21 = ssub.s32 %s15, 2
      %s31 = sadd.s32 1, %s24
      %p32 = scmp.ge.s32.totalorder %s31, 1
      %s33 = scalar_select %p32, 0, %s31
      %s34 = sadd.s32 1, %s23
      %s35 = scalar_select %p32, %s34, %s23
      %p36 = scmp.ge.s32.totalorder %s35, 1
      %s37 = scalar_select %p36, 0, %s35
      %s38 = sadd.s32 1, %s22
      %s39 = scalar_select %p36, %s38, %s22
      %p40 = scmp.ge.s32.totalorder %s39, 2
      %s41 = scalar_select %p40, 0, %s39
      %s42 = ssub.s32 %s22, %s41
      %s43 = ssub.s32 %s23, %s37
      %s44 = sor.u32 %s42, %s43
      %s45 = ssub.s32 %s24, %s33
      %s46 = sor.u32 %s44, %s45
      %p47 = scmp.eq.s32.totalorder %s46, 0
      %s49 = sadd.s32 %s48, 1
      %s50 = scalar_select %p47, %s48, %s49
      %p53 = pneg %p47
      %p54 = scmp.eq.s32.totalorder %s15, 1
      %p55 = por %p53, %p54
      %p56 = scmp.ne.s32.totalorder %s48, %s51
      %p57 = scmp.eq.s32.totalorder %s15, 0
      %p58 = por %p56, %p57
      %p59 = scmp.ne.s32.totalorder %s48, %s51
      %p60 = scmp.eq.s32.totalorder %s20, 1
      %p61 = por %p59, %p60
      %p62 = scmp.ne.s32.totalorder %s51, %s52
      %p63 = scmp.eq.s32.totalorder %s20, 0
      %p64 = por %p62, %p63
      %p65 = scmp.ne.s32.totalorder %s51, %s52
      %p66 = scmp.eq.s32.totalorder %s21, 1
      %p67 = por %p65, %p66
      %p69 = scmp.ne.s32.totalorder %s52, %s68
      %p70 = scmp.eq.s32.totalorder %s21, 0
      %p71 = por %p69, %p70
      %s72 = ssub.s32 %s24, %s33
      %p73 = scmp.eq.s32.totalorder %s72, 0
      %s75 = sadd.s32 %s74, 1
      %s76 = scalar_select %p73, %s74, %s75
      %p79 = pneg %p73
      %p80 = scmp.eq.s32.totalorder %s15, 1
      %p81 = por %p79, %p80
      %p82 = scmp.ne.s32.totalorder %s74, %s77
      %p83 = scmp.eq.s32.totalorder %s15, 0
      %p84 = por %p82, %p83
      %p85 = scmp.ne.s32.totalorder %s74, %s77
      %p86 = scmp.eq.s32.totalorder %s20, 1
      %p87 = por %p85, %p86
      %p88 = scmp.ne.s32.totalorder %s77, %s78
      %p89 = scmp.eq.s32.totalorder %s20, 0
      %p90 = por %p88, %p89
      %p91 = scmp.ne.s32.totalorder %s77, %s78
      %p92 = scmp.eq.s32.totalorder %s21, 1
      %p93 = por %p91, %p92
      %p95 = scmp.ne.s32.totalorder %s78, %s94
      %p96 = scmp.eq.s32.totalorder %s21, 0
      %p97 = por %p95, %p96
      %s99 = sadd.s32 %s98, 1
      %p102 = scmp.eq.s32.totalorder %s15, 1
      %p103 = scmp.ne.s32.totalorder %s98, %s100
      %p104 = scmp.eq.s32.totalorder %s15, 0
      %p105 = por %p103, %p104
      %p106 = scmp.ne.s32.totalorder %s98, %s100
      %p107 = scmp.eq.s32.totalorder %s20, 1
      %p108 = por %p106, %p107
      %p109 = scmp.ne.s32.totalorder %s100, %s101
      %p110 = scmp.eq.s32.totalorder %s20, 0
      %p111 = por %p109, %p110
      %p112 = scmp.ne.s32.totalorder %s100, %s101
      %p113 = scmp.eq.s32.totalorder %s21, 1
      %p114 = por %p112, %p113
      %p116 = scmp.ne.s32.totalorder %s101, %s115
      %p117 = scmp.eq.s32.totalorder %s21, 0
      %p118 = por %p116, %p117
      %s119 = ssub.s32 %s22, %s41
      %s120 = ssub.s32 %s23, %s37
      %s121 = sor.u32 %s119, %s120
      %s122 = ssub.s32 %s24, %s33
      %s123 = sor.u32 %s121, %s122
      %p124 = scmp.eq.s32.totalorder %s123, 0
      %s126 = sadd.s32 %s125, 1
      %s127 = scalar_select %p124, %s125, %s126
      %p130 = pneg %p124
      %p131 = scmp.eq.s32.totalorder %s15, 1
      %p132 = por %p130, %p131
      %p133 = scmp.ne.s32.totalorder %s125, %s128
      %p134 = scmp.eq.s32.totalorder %s15, 0
      %p135 = por %p133, %p134
      %p136 = scmp.ne.s32.totalorder %s125, %s128
      %p137 = scmp.eq.s32.totalorder %s20, 1
      %p138 = por %p136, %p137
      %p139 = scmp.ne.s32.totalorder %s128, %s129
      %p140 = scmp.eq.s32.totalorder %s20, 0
      %p141 = por %p139, %p140
      %p142 = scmp.ne.s32.totalorder %s128, %s129
      %p143 = scmp.eq.s32.totalorder %s21, 1
      %p144 = por %p142, %p143
      %p146 = scmp.ne.s32.totalorder %s129, %s145
      %p147 = scmp.eq.s32.totalorder %s21, 0
      %p148 = por %p146, %p147
      %p149 = scmp.le.s32.totalorder 1, %s15
      %p150 = scmp.lt.s32.totalorder %s15, 3
      %p151 = pnand %p149, %p150
      %p152 = pneg %p151
      // Predicated region
      $region9: #{tpu_custom_call.1} parent=5 // pred_check
        _
      $region10: #{tpu_custom_call.1} parent=5 // pred_check_branch
        %154 = sbr.rel (%p151) target = $region12
      $region11: #{tpu_custom_call.1} parent=5 // pred_region
        %s155 = ssub.s32 %s15, 1
        // Predicated region
        $region13: #{tpu_custom_call.1} parent=11 // pred_check
          %p156 = pneg %p90
        $region14: #{tpu_custom_call.1} parent=11 // pred_check_branch
          %158 = sbr.rel (%p156) target = $region16
        $region15: #{tpu_custom_call.1} parent=11 // pred_region
          %s159 = smul.u32 2, %s27
          %p160 = scmp.lt.s32.totalorder %s159, 1
          %s161 = scalar_select %p160, %s159, 1
          %s162 = scalar_lea.vmem %s1, %s161
          %s163 = smul.u32 2, %s27
        $region16: #{tpu_custom_call.1} parent=11 // pred_fallthru
          _
        // Predicated region
        $region17: #{tpu_custom_call.1} parent=11 // pred_check
          %p164 = pneg %p111
        $region18: #{tpu_custom_call.1} parent=11 // pred_check_branch
          %166 = sbr.rel (%p164) target = $region20
        $region19: #{tpu_custom_call.1} parent=11 // pred_region
          _
        $region20: #{tpu_custom_call.1} parent=11 // pred_fallthru
          _
      $region12: #{tpu_custom_call.1} parent=5 // pred_fallthru
        _
      %p167 = scmp.lt.s32.totalorder %s15, 2
      // Predicated region
      $region21: #{tpu_custom_call.1} parent=5 // pred_check
        %p168 = pneg %p167
      $region22: #{tpu_custom_call.1} parent=5 // pred_check_branch
        %170 = sbr.rel (%p168) target = $region24
      $region23: #{tpu_custom_call.1} parent=5 // pred_region
        // Predicated region
        $region25: #{tpu_custom_call.1} parent=23 // pred_check
          %p171 = pneg %p58
        $region26: #{tpu_custom_call.1} parent=23 // pred_check_branch
          %173 = sbr.rel (%p171) target = $region28
        $region27: #{tpu_custom_call.1} parent=23 // pred_region
          %s174 = sand.u32 %s48, 1
          %s175 = scalar_lea.sflag [#allocation3], %s174
          %s176 = sand.u32 %s48, 1
          %s177 = smul.addr %s176, 8
          %s178 = scalar_lea.vmem [#allocation2], %s177
          %s179 = smul.u32 2, %s24
          %s181 = ssub.s32 128, 128
          %182 = vsyncadd %s175, %s181
          %s183 = smul.addr %s23, 2
          %s184 = sadd.s32 %s179, %s183
          %s185 = smul.addr %s22, 2
          %s186 = sadd.s32 %s184, %s185
          %s187 = smul.addr %s186, 64
          %s188 = scalar_lea.hbm %s0, %s187
          %s190 = sshll.u32 %s178, 4
          %s191 = int_to_ptr.vmem [resolvable:$true] %s190
          %193 = dma.hbm_to_vmem [thread:$0]  %s188, 128, %s191, %s175
        $region28: #{tpu_custom_call.1} parent=23 // pred_fallthru
          _
      $region24: #{tpu_custom_call.1} parent=5 // pred_fallthru
        _
      %p194 = scmp.le.s32.totalorder 1, %s15
      %p195 = scmp.lt.s32.totalorder %s15, 3
      %p196 = pnand %p194, %p195
      %p197 = pneg %p196
      // Predicated region
      $region29: #{tpu_custom_call.1} parent=5 // pred_check
        _
      $region30: #{tpu_custom_call.1} parent=5 // pred_check_branch
        %199 = sbr.rel (%p196) target = $region32
      $region31: #{tpu_custom_call.1} parent=5 // pred_region
        %s200 = ssub.s32 %s15, 1
        %s201 = sand.u32 %s51, 1
        %s202 = scalar_lea.sflag [#allocation3], %s201
        %s203 = sand.u32 %s51, 1
        %s204 = smul.addr %s203, 8
        %s205 = scalar_lea.vmem [#allocation2], %s204
        // Predicated region
        $region33: #{tpu_custom_call.1} parent=31 // pred_check
          %p206 = pneg %p64
        $region34: #{tpu_custom_call.1} parent=31 // pred_check_branch
          %208 = sbr.rel (%p206) target = $region36
        $region35: #{tpu_custom_call.1} parent=31 // pred_region
          %209 = dma.done %s202, 128
        $region36: #{tpu_custom_call.1} parent=31 // pred_fallthru
          _
        %s210 = sand.u32 %s51, 1
        %s211 = scalar_lea.sflag [#allocation3], %s210
        %s212 = sand.u32 %s51, 1
        %s213 = smul.addr %s212, 8
        %s214 = scalar_lea.vmem [#allocation2], %s213
        %p215 = pneg %p64
        %p216 = pneg %p61
        %s217 = smul.u32 2, %s27
        %p218 = scmp.lt.s32.totalorder %s217, 1
        %s219 = scalar_select %p218, %s217, 1
        %s220 = scalar_lea.vmem %s1, %s219
        %p221 = pneg %p90
        %p222 = pneg %p87
        %p223 = pneg %p111
        %p224 = pneg %p108
        %p225 = pneg %p141
        %p226 = pneg %p138
        %s227 = sand.u32 %s128, 1
        %s228 = scalar_lea.sflag [#allocation4], %s227
        %s229 = sand.u32 %s128, 1
        %s230 = smul.addr %s229, 8
        %s231 = scalar_lea.vmem [#allocation5], %s230
        %s232 = smul.u32 2, %s27
        %s233 = smul.u32 2, %s27
        %p234 = scmp.lt.s32.totalorder %s233, 1
        %s235 = scalar_select %p234, %s233, 1
        %s236 = scalar_lea.vmem %s1, %s235
        %s237 = smul.u32 2, %s27
        %s238 = smul.u32 2, %s27
        %v239 = vld [vmem:[%s2] sm:$0xf]
        %v240 = vld [vmem:[%s236] sm:$0x3]
        %v242 = vlaneseq
        %v243 = vshrl.u32 %v242, 7
        %v244 = vsub.s32 0, %v243
        %v245 = vrot.slane %v240, %v244
        %v246 = vlaneseq
        %v247 = vshrl.u32 %v246, 7
        %v248 = vsub.s32 1, %v247
        %v249 = vrot.slane %v240, %v248
        %253 = vset.pattern.permute.xlu0 0
        %254 = vperm.xlu0 %253, %v239
        %v255 = vpop.permute.xlu0 %254
        %v257 = vmul.f32 %v245, %v255
        %v258 = vmul.f32 %v249, %v255
        %v259 = vld [vmem:[%s205] sm:$0xff]
        %v262 = vcombine.low %v257, %v258
        %v264 = vadd.f32 %v259, %v262
        %265 = vst [vmem:[%s231] sm:$0xff] %v264
        %s266 = sand.u32 %s128, 1
        %s267 = scalar_lea.sflag [#allocation4], %s266
        %s268 = sand.u32 %s128, 1
        %s269 = smul.addr %s268, 8
        %s270 = scalar_lea.vmem [#allocation5], %s269
        // Predicated region
        $region37: #{tpu_custom_call.1} parent=31 // pred_check
          %p271 = pneg %p138
        $region38: #{tpu_custom_call.1} parent=31 // pred_check_branch
          %273 = sbr.rel (%p271) target = $region40
        $region39: #{tpu_custom_call.1} parent=31 // pred_region
          %s274 = smul.u32 2, %s27
          %s276 = ssub.s32 128, 128
          %277 = vsyncadd %s267, %s276
          %s278 = smul.addr %s26, 2
          %s279 = sadd.s32 %s274, %s278
          %s280 = smul.addr %s25, 2
          %s281 = sadd.s32 %s279, %s280
          %s282 = smul.addr %s281, 64
          %s283 = scalar_lea.hbm %s3, %s282
          %s285 = sshll.u32 %s270, 4
          %s286 = int_to_ptr.vmem [resolvable:$true] %s285
          %288 = dma.vmem_to_hbm [thread:$0]  %s286, 128, %s283, %s267
        $region40: #{tpu_custom_call.1} parent=31 // pred_fallthru
          _
      $region32: #{tpu_custom_call.1} parent=5 // pred_fallthru
        _
      %p289 = scmp.le.s32.totalorder 2, %s15
      // Predicated region
      $region41: #{tpu_custom_call.1} parent=5 // pred_check
        %p290 = pneg %p289
      $region42: #{tpu_custom_call.1} parent=5 // pred_check_branch
        %292 = sbr.rel (%p290) target = $region44
      $region43: #{tpu_custom_call.1} parent=5 // pred_region
        %s293 = ssub.s32 %s15, 2
        // Predicated region
        $region45: #{tpu_custom_call.1} parent=43 // pred_check
          %p294 = pneg %p144
        $region46: #{tpu_custom_call.1} parent=43 // pred_check_branch
          %296 = sbr.rel (%p294) target = $region48
        $region47: #{tpu_custom_call.1} parent=43 // pred_region
          %s297 = sand.u32 %s129, 1
          %s298 = scalar_lea.sflag [#allocation4], %s297
          %s299 = sand.u32 %s129, 1
          %s300 = smul.addr %s299, 8
          %s301 = scalar_lea.vmem [#allocation5], %s300
          %302 = dma.done %s298, 128
        $region48: #{tpu_custom_call.1} parent=43 // pred_fallthru
          _
      $region44: #{tpu_custom_call.1} parent=5 // pred_fallthru
        _
    $region6: #{tpu_custom_call.1} parent=1 // loop_footer
      %s19 = sadd.s32 1, %s15
    $region7: #{tpu_custom_call.1} parent=1 // loop_footer_branch
      %14 = sbr.rel target = $region3
    $region8: #{tpu_custom_call.1} parent=1 // loop_exit
      _
    %303 = vsyncpa [#allocation3], 1
    %s304 = scalar_lea.sflag [#allocation3], 1
    %305 = vsyncpa %s304, 1
    %306 = vsyncpa [#allocation4], 1
    %s307 = scalar_lea.sflag [#allocation4], 1
    %308 = vsyncpa %s307, 1

</llo_original>
